<compile_context>
chip_gen: v5e
topology: v5e:2x2
jax: 0.10.0
libtpu: 0.0.40
codegen_flags: <defaults>
</compile_context>

<pallas_src>
import functools

import jax
import jax.numpy as jnp
from jax.experimental import pallas as pl
from jax.experimental.pallas import tpu as pltpu


PAD = 128  # lane width: every channel dimension is zero-padded to this


# ----------------------------------------------------------------------------
# Fused Pallas kernel: conv1 -> conv2 -> (z = mu) -> conv3 -> conv4
#                      + predict_edge_time, all in one invocation.
# ----------------------------------------------------------------------------
def _fused_vae_kernel(row_ref, col_ref, colt_ref, x_ref, ew_ref,
                      wc1_ref, bc1_ref, w1_ref, b1_ref,
                      wc2_ref, bc2_ref, w2_ref, b2_ref,
                      wc3_ref, bc3_ref, w3_ref, b3_ref,
                      wc4_ref, bc4_ref, w4_ref, b4_ref,
                      wp_ref, bp_ref,
                      enc_ref, recon_ref, pet_ref, *, latent):
    f32 = jnp.float32
    n = x_ref.shape[0]          # nodes
    e = row_ref.shape[0]        # edges

    # --- graph structure: built ONCE, reused by all four conv layers --------
    row = row_ref[...]          # (E, 1) int32 source node ids
    col = col_ref[...]          # (E, 1) int32 target node ids
    colt = colt_ref[...]        # (1, E) int32 target node ids

    iota_en = jax.lax.broadcasted_iota(jnp.int32, (e, n), 1)
    row_oh = (iota_en == row).astype(f32)    # (E, N): x[row] gather as a matmul
    col_oh = (iota_en == col).astype(f32)    # (E, N): x[col] gather as a matmul
    iota_ne = jax.lax.broadcasted_iota(jnp.int32, (n, e), 0)
    dst_oh = (iota_ne == colt).astype(f32)   # (N, E)
    deg = jnp.sum(dst_oh, axis=1, keepdims=True)
    agg = dst_oh / jnp.maximum(deg, 1.0)     # (N, E) mean-aggregation matrix

    x = x_ref[...]              # (N, 128) node features, zero-padded
    ewp = ew_ref[...]           # (E, 128) zeros except lanes 126/127 = edge_weight

    def conv(h, wc, bc, w, b, act):
        # message(): relu(Linear(cat([x_j, edge_weight])))
        # The cat is folded into ONE K=128 matmul: edge weights sit at fixed
        # lanes 126/127 and the combiner weight has its edge-weight rows there.
        msg_in = jnp.dot(row_oh, h, preferred_element_type=f32) + ewp
        msg = jnp.maximum(
            jnp.dot(msg_in, wc[...], preferred_element_type=f32) + bc[...], 0.0)
        # aggregate(mean) over incoming edges per target node
        aggm = jnp.dot(agg, msg, preferred_element_type=f32)
        # Bayesian linear (eval mode: weight_mu / bias_mu) + VAE activation
        out = jnp.dot(aggm, w[...], preferred_element_type=f32) + b[...]
        return jnp.maximum(out, 0.0) if act == "relu" else jnp.tanh(out)

    # encode
    h1 = conv(x, wc1_ref, bc1_ref, w1_ref, b1_ref, "relu")
    enc = conv(h1, wc2_ref, bc2_ref, w2_ref, b2_ref, "relu")
    enc_ref[...] = enc          # lanes [:latent] = mu, [latent:2*latent] = logvar

    # reparametrize (eval): z = mu  (keep only the first `latent` lanes)
    lane = jax.lax.broadcasted_iota(jnp.int32, enc.shape, 1)
    z = jnp.where(lane < latent, enc, 0.0)

    # decode
    h3 = conv(z, wc3_ref, bc3_ref, w3_ref, b3_ref, "relu")
    recon_ref[...] = conv(h3, wc4_ref, bc4_ref, w4_ref, b4_ref, "tanh")

    # predict_edge_time: Linear(cat([|x[row] - x[col]|, edge_weight]))
    xr = jnp.dot(row_oh, x, preferred_element_type=f32)
    xc = jnp.dot(col_oh, x, preferred_element_type=f32)
    feats = jnp.abs(xr - xc) + ewp           # padded lanes are |0-0|=0, + ew
    pet_ref[...] = (jnp.dot(feats, wp_ref[...], preferred_element_type=f32)
                    + bp_ref[...])           # result lives in lane 0


# ----------------------------------------------------------------------------
# Parameter init (natural shapes, matching the PyTorch module) + lane padding
# ----------------------------------------------------------------------------
def _init_conv_params(key, cin, cout):
    k1, k2, k3 = jax.random.split(key, 3)
    # weight_mu: xavier_uniform_, bias_mu: zeros (eval mode ignores *_rho)
    lim = (6.0 / (cin + cout)) ** 0.5
    w = jax.random.uniform(k1, (cin, cout), jnp.float32, -lim, lim)
    b = jnp.zeros((1, cout), jnp.float32)
    # edge_feature_combiner = Linear(cin+2, cin); torch default uniform init
    bound = 1.0 / (cin + 2) ** 0.5
    wc = jax.random.uniform(k2, (cin + 2, cin), jnp.float32, -bound, bound)  # W^T
    bc = jax.random.uniform(k3, (1, cin), jnp.float32, -bound, bound)
    wcx, wce = wc[:cin, :], wc[cin:, :]
    return (wcx, wce, bc, w, b)


def init_params(key, num_features, hidden_size, latent_size, combined_dim=9):
    keys = jax.random.split(key, 6)
    params = {
        "conv1": _init_conv_params(keys[0], num_features, hidden_size),
        "conv2": _init_conv_params(keys[1], hidden_size, 2 * latent_size),
        "conv3": _init_conv_params(keys[2], latent_size, hidden_size),
        "conv4": _init_conv_params(keys[3], hidden_size, num_features),
    }
    bound = 1.0 / combined_dim ** 0.5
    wp = jax.random.uniform(keys[4], (combined_dim, 1), jnp.float32, -bound, bound)
    bp = jax.random.uniform(keys[5], (1, 1), jnp.float32, -bound, bound)
    params["edge_time_predictor"] = (wp[:num_features, :], wp[num_features:, :], bp)
    return params


def _zero_pad(a, shape):
    out = jnp.zeros(shape, jnp.float32)
    return out.at[tuple(slice(0, s) for s in a.shape)].set(a)


def _pad_conv_params(p):
    wcx, wce, bc, w, b = p
    cin, cout = wcx.shape[0], w.shape[1]
    wc_pad = jnp.zeros((PAD, PAD), jnp.float32)
    wc_pad = wc_pad.at[:cin, :cin].set(wcx)          # node-feature rows
    wc_pad = wc_pad.at[PAD - 2:, :cin].set(wce)      # edge-weight rows (lanes 126/127)
    bc_pad = _zero_pad(bc, (1, PAD))
    w_pad = jnp.zeros((PAD, PAD), jnp.float32).at[:cin, :cout].set(w)
    b_pad = _zero_pad(b, (1, PAD))
    return wc_pad, bc_pad, w_pad, b_pad


def _pad_edge_params(p, num_features):
    wpf, wpe, bp = p
    wp_pad = jnp.zeros((PAD, PAD), jnp.float32)
    wp_pad = wp_pad.at[:num_features, :1].set(wpf)
    wp_pad = wp_pad.at[PAD - 2:, :1].set(wpe)
    bp_pad = jnp.zeros((1, PAD), jnp.float32).at[:, :1].set(bp)
    return wp_pad, bp_pad


# ----------------------------------------------------------------------------
# Full forward (matches BayesianGCNVAE.forward in eval mode)
# ----------------------------------------------------------------------------
@functools.partial(jax.jit, static_argnames=("latent_size",))
def bayesian_gcn_vae_forward(params, x, edge_index, edge_weight, latent_size):
    n, f = x.shape
    e = edge_weight.shape[0]

    # pad everything to the 128-lane width (done once, tiny XLA glue)
    padded = []
    for name in ("conv1", "conv2", "conv3", "conv4"):
        padded.extend(_pad_conv_params(params[name]))
    padded.extend(_pad_edge_params(params["edge_time_predictor"], f))

    x_pad = _zero_pad(x, (n, PAD))
    ew_pad = jnp.zeros((e, PAD), jnp.float32).at[:, PAD - 2:].set(edge_weight)
    row2 = edge_index[0].astype(jnp.int32).reshape(e, 1)
    col2 = edge_index[1].astype(jnp.int32).reshape(e, 1)
    colt = edge_index[1].astype(jnp.int32).reshape(1, e)

    kern = functools.partial(_fused_vae_kernel, latent=latent_size)
    enc, recon, pet = pl.pallas_call(
        kern,
        out_shape=(
            jax.ShapeDtypeStruct((n, PAD), jnp.float32),   # relu(conv2): [mu|logvar|0]
            jax.ShapeDtypeStruct((n, PAD), jnp.float32),   # tanh(conv4): recon (padded)
            jax.ShapeDtypeStruct((e, PAD), jnp.float32),   # edge time in lane 0
        ),
        compiler_params=pltpu.CompilerParams(vmem_limit_bytes=32 * 1024 * 1024),
    )(row2, col2, colt, x_pad, ew_pad, *padded)

    mu = enc[:, :latent_size]
    logvar = enc[:, latent_size:2 * latent_size]
    return recon[:, :f], mu, logvar, pet[:, :1]


# ----------------------------------------------------------------------------
# Pure-JAX reference of the PyTorch eval-mode forward (for verification)
# ----------------------------------------------------------------------------
def _ref_forward(params, x, edge_index, edge_weight, latent):
    row, col = edge_index[0], edge_index[1]
    n = x.shape[0]

    def conv(h, p, act):
        wcx, wce, bc, w, b = p
        msg = jnp.maximum(h[row] @ wcx + edge_weight @ wce + bc, 0.0)
        s = jnp.zeros((n, msg.shape[1]), jnp.float32).at[col].add(msg)
        c = jnp.zeros((n, 1), jnp.float32).at[col].add(1.0)
        agg = s / jnp.maximum(c, 1.0)
        out = agg @ w + b
        return jnp.maximum(out, 0.0) if act == "relu" else jnp.tanh(out)

    h1 = conv(x, params["conv1"], "relu")
    h2 = conv(h1, params["conv2"], "relu")
    mu, logvar = h2[:, :latent], h2[:, latent:2 * latent]
    wpf, wpe, bp = params["edge_time_predictor"]
    pet = jnp.abs(x[row] - x[col]) @ wpf + edge_weight @ wpe + bp
    d = conv(mu, params["conv3"], "relu")
    recon = conv(d, params["conv4"], "tanh")
    return recon, mu, logvar, pet


if __name__ == "__main__":
    NUM_FEATURES = 7        # 7 node features + 2 edge-weight features = 9 combined
    HIDDEN = 32
    LATENT = 8
    N_NODES = 16
    N_EDGES = 32

    key = jax.random.PRNGKey(0)
    k_x, k_src, k_dst, k_ew, k_par = jax.random.split(key, 5)

    x = jax.random.normal(k_x, (N_NODES, NUM_FEATURES), jnp.float32)
    row = jax.random.randint(k_src, (N_EDGES,), 0, N_NODES)
    col = jax.random.randint(k_dst, (N_EDGES,), 0, N_NODES)
    edge_index = jnp.stack([row, col], axis=0)                   # (2, E)
    edge_weight = jax.random.normal(k_ew, (N_EDGES, 2), jnp.float32)

    params = init_params(k_par, NUM_FEATURES, HIDDEN, LATENT)

    recon, mu, logvar, pred_t = bayesian_gcn_vae_forward(
        params, x, edge_index, edge_weight, latent_size=LATENT)
    jax.block_until_ready((recon, mu, logvar, pred_t))

    assert recon.shape == (N_NODES, NUM_FEATURES)
    assert mu.shape == (N_NODES, LATENT)
    assert logvar.shape == (N_NODES, LATENT)
    assert pred_t.shape == (N_EDGES, 1)

    # correctness vs. pure-JAX reference (loose tol covers MXU f32 matmul paths)
    r_ref, mu_ref, lv_ref, pt_ref = _ref_forward(params, x, edge_index,
                                                 edge_weight, LATENT)
    for got, ref in ((recon, r_ref), (mu, mu_ref), (logvar, lv_ref),
                     (pred_t, pt_ref)):
        assert jnp.allclose(got, ref, atol=5e-2, rtol=5e-2), \
            float(jnp.max(jnp.abs(got - ref)))

    print("KERNEL_OK")
</pallas_src>

<mosaic_0001>
module attributes {stable_mosaic.version = 11 : i64} {
  func.func @_fused_vae_kernel(%arg0: memref<32x1xi32, #tpu.memory_space<vmem>>, %arg1: memref<32x1xi32, #tpu.memory_space<vmem>>, %arg2: memref<1x32xi32, #tpu.memory_space<vmem>>, %arg3: memref<16x128xf32, #tpu.memory_space<vmem>>, %arg4: memref<32x128xf32, #tpu.memory_space<vmem>>, %arg5: memref<128x128xf32, #tpu.memory_space<vmem>>, %arg6: memref<1x128xf32, #tpu.memory_space<vmem>>, %arg7: memref<128x128xf32, #tpu.memory_space<vmem>>, %arg8: memref<1x128xf32, #tpu.memory_space<vmem>>, %arg9: memref<128x128xf32, #tpu.memory_space<vmem>>, %arg10: memref<1x128xf32, #tpu.memory_space<vmem>>, %arg11: memref<128x128xf32, #tpu.memory_space<vmem>>, %arg12: memref<1x128xf32, #tpu.memory_space<vmem>>, %arg13: memref<128x128xf32, #tpu.memory_space<vmem>>, %arg14: memref<1x128xf32, #tpu.memory_space<vmem>>, %arg15: memref<128x128xf32, #tpu.memory_space<vmem>>, %arg16: memref<1x128xf32, #tpu.memory_space<vmem>>, %arg17: memref<128x128xf32, #tpu.memory_space<vmem>>, %arg18: memref<1x128xf32, #tpu.memory_space<vmem>>, %arg19: memref<128x128xf32, #tpu.memory_space<vmem>>, %arg20: memref<1x128xf32, #tpu.memory_space<vmem>>, %arg21: memref<128x128xf32, #tpu.memory_space<vmem>>, %arg22: memref<1x128xf32, #tpu.memory_space<vmem>>, %arg23: memref<16x128xf32, #tpu.memory_space<vmem>>, %arg24: memref<16x128xf32, #tpu.memory_space<vmem>>, %arg25: memref<32x128xf32, #tpu.memory_space<vmem>>) attributes {dimension_semantics = [], scalar_prefetch = 0 : i64, scratch_operands = 0 : i64, tpu.core_type = #tpu.core_type<tc>} {
    %c0 = arith.constant 0 : index
    %c0_0 = arith.constant 0 : index
    %0 = vector.load %arg0[%c0, %c0_0] : memref<32x1xi32, #tpu.memory_space<vmem>>, vector<32x1xi32>
    %c0_1 = arith.constant 0 : index
    %c0_2 = arith.constant 0 : index
    %1 = vector.load %arg1[%c0_1, %c0_2] : memref<32x1xi32, #tpu.memory_space<vmem>>, vector<32x1xi32>
    %c0_3 = arith.constant 0 : index
    %c0_4 = arith.constant 0 : index
    %2 = vector.load %arg2[%c0_3, %c0_4] : memref<1x32xi32, #tpu.memory_space<vmem>>, vector<1x32xi32>
    %3 = tpu.iota {dimensions = array<i32: 1>} : vector<32x16xi32>
    %4 = vector.broadcast %0 : vector<32x1xi32> to vector<32x16xi32>
    %5 = arith.cmpi eq, %3, %4 : vector<32x16xi32>
    %6 = arith.extui %5 : vector<32x16xi1> to vector<32x16xi32>
    %7 = arith.sitofp %6 : vector<32x16xi32> to vector<32x16xf32>
    %8 = vector.broadcast %1 : vector<32x1xi32> to vector<32x16xi32>
    %9 = arith.cmpi eq, %3, %8 : vector<32x16xi32>
    %10 = arith.extui %9 : vector<32x16xi1> to vector<32x16xi32>
    %11 = arith.sitofp %10 : vector<32x16xi32> to vector<32x16xf32>
    %12 = tpu.iota {dimensions = array<i32: 0>} : vector<16x32xi32>
    %13 = vector.broadcast %2 : vector<1x32xi32> to vector<16x32xi32>
    %14 = arith.cmpi eq, %12, %13 : vector<16x32xi32>
    %15 = arith.extui %14 : vector<16x32xi1> to vector<16x32xi32>
    %16 = arith.sitofp %15 : vector<16x32xi32> to vector<16x32xf32>
    %cst = arith.constant dense<0.000000e+00> : vector<16xf32>
    %17 = vector.multi_reduction <add>, %16, %cst [1] : vector<16x32xf32> to vector<16xf32>
    %18 = vector.shape_cast %17 : vector<16xf32> to vector<16x1xf32>
    %cst_5 = arith.constant 1.000000e+00 : f32
    %19 = vector.broadcast %cst_5 : f32 to vector<16x1xf32>
    %20 = arith.maximumf %18, %19 : vector<16x1xf32>
    %21 = vector.broadcast %20 : vector<16x1xf32> to vector<16x32xf32>
    %22 = arith.divf %16, %21 : vector<16x32xf32>
    %c0_6 = arith.constant 0 : index
    %c0_7 = arith.constant 0 : index
    %23 = vector.load %arg3[%c0_6, %c0_7] : memref<16x128xf32, #tpu.memory_space<vmem>>, vector<16x128xf32>
    %c0_8 = arith.constant 0 : index
    %c0_9 = arith.constant 0 : index
    %24 = vector.load %arg4[%c0_8, %c0_9] : memref<32x128xf32, #tpu.memory_space<vmem>>, vector<32x128xf32>
    %cst_10 = arith.constant dense<0.000000e+00> : vector<32x128xf32>
    %25 = tpu.matmul %7, %23, %cst_10 {dimension_numbers = #tpu.dot_dimension_numbers<[1], [0], [0], [1], [0, 0, 1, 1], [], []>} : vector<32x16xf32>, vector<16x128xf32>, vector<32x128xf32> -> vector<32x128xf32>
    %26 = arith.addf %25, %24 : vector<32x128xf32>
    %c0_11 = arith.constant 0 : index
    %c0_12 = arith.constant 0 : index
    %27 = vector.load %arg5[%c0_11, %c0_12] : memref<128x128xf32, #tpu.memory_space<vmem>>, vector<128x128xf32>
    %cst_13 = arith.constant dense<0.000000e+00> : vector<32x128xf32>
    %28 = tpu.matmul %26, %27, %cst_13 {dimension_numbers = #tpu.dot_dimension_numbers<[1], [0], [0], [1], [0, 0, 1, 1], [], []>} : vector<32x128xf32>, vector<128x128xf32>, vector<32x128xf32> -> vector<32x128xf32>
    %c0_14 = arith.constant 0 : index
    %c0_15 = arith.constant 0 : index
    %29 = vector.load %arg6[%c0_14, %c0_15] : memref<1x128xf32, #tpu.memory_space<vmem>>, vector<1x128xf32>
    %30 = vector.broadcast %29 : vector<1x128xf32> to vector<32x128xf32>
    %31 = arith.addf %28, %30 : vector<32x128xf32>
    %cst_16 = arith.constant 0.000000e+00 : f32
    %32 = vector.broadcast %cst_16 : f32 to vector<32x128xf32>
    %33 = arith.maximumf %31, %32 : vector<32x128xf32>
    %cst_17 = arith.constant dense<0.000000e+00> : vector<16x128xf32>
    %34 = tpu.matmul %22, %33, %cst_17 {dimension_numbers = #tpu.dot_dimension_numbers<[1], [0], [0], [1], [0, 0, 1, 1], [], []>} : vector<16x32xf32>, vector<32x128xf32>, vector<16x128xf32> -> vector<16x128xf32>
    %c0_18 = arith.constant 0 : index
    %c0_19 = arith.constant 0 : index
    %35 = vector.load %arg7[%c0_18, %c0_19] : memref<128x128xf32, #tpu.memory_space<vmem>>, vector<128x128xf32>
    %cst_20 = arith.constant dense<0.000000e+00> : vector<16x128xf32>
    %36 = tpu.matmul %34, %35, %cst_20 {dimension_numbers = #tpu.dot_dimension_numbers<[1], [0], [0], [1], [0, 0, 1, 1], [], []>} : vector<16x128xf32>, vector<128x128xf32>, vector<16x128xf32> -> vector<16x128xf32>
    %c0_21 = arith.constant 0 : index
    %c0_22 = arith.constant 0 : index
    %37 = vector.load %arg8[%c0_21, %c0_22] : memref<1x128xf32, #tpu.memory_space<vmem>>, vector<1x128xf32>
    %38 = vector.broadcast %37 : vector<1x128xf32> to vector<16x128xf32>
    %39 = arith.addf %36, %38 : vector<16x128xf32>
    %cst_23 = arith.constant 0.000000e+00 : f32
    %40 = vector.broadcast %cst_23 : f32 to vector<16x128xf32>
    %41 = arith.maximumf %39, %40 : vector<16x128xf32>
    %cst_24 = arith.constant dense<0.000000e+00> : vector<32x128xf32>
    %42 = tpu.matmul %7, %41, %cst_24 {dimension_numbers = #tpu.dot_dimension_numbers<[1], [0], [0], [1], [0, 0, 1, 1], [], []>} : vector<32x16xf32>, vector<16x128xf32>, vector<32x128xf32> -> vector<32x128xf32>
    %43 = arith.addf %42, %24 : vector<32x128xf32>
    %c0_25 = arith.constant 0 : index
    %c0_26 = arith.constant 0 : index
    %44 = vector.load %arg9[%c0_25, %c0_26] : memref<128x128xf32, #tpu.memory_space<vmem>>, vector<128x128xf32>
    %cst_27 = arith.constant dense<0.000000e+00> : vector<32x128xf32>
    %45 = tpu.matmul %43, %44, %cst_27 {dimension_numbers = #tpu.dot_dimension_numbers<[1], [0], [0], [1], [0, 0, 1, 1], [], []>} : vector<32x128xf32>, vector<128x128xf32>, vector<32x128xf32> -> vector<32x128xf32>
    %c0_28 = arith.constant 0 : index
    %c0_29 = arith.constant 0 : index
    %46 = vector.load %arg10[%c0_28, %c0_29] : memref<1x128xf32, #tpu.memory_space<vmem>>, vector<1x128xf32>
    %47 = vector.broadcast %46 : vector<1x128xf32> to vector<32x128xf32>
    %48 = arith.addf %45, %47 : vector<32x128xf32>
    %cst_30 = arith.constant 0.000000e+00 : f32
    %49 = vector.broadcast %cst_30 : f32 to vector<32x128xf32>
    %50 = arith.maximumf %48, %49 : vector<32x128xf32>
    %cst_31 = arith.constant dense<0.000000e+00> : vector<16x128xf32>
    %51 = tpu.matmul %22, %50, %cst_31 {dimension_numbers = #tpu.dot_dimension_numbers<[1], [0], [0], [1], [0, 0, 1, 1], [], []>} : vector<16x32xf32>, vector<32x128xf32>, vector<16x128xf32> -> vector<16x128xf32>
    %c0_32 = arith.constant 0 : index
    %c0_33 = arith.constant 0 : index
    %52 = vector.load %arg11[%c0_32, %c0_33] : memref<128x128xf32, #tpu.memory_space<vmem>>, vector<128x128xf32>
    %cst_34 = arith.constant dense<0.000000e+00> : vector<16x128xf32>
    %53 = tpu.matmul %51, %52, %cst_34 {dimension_numbers = #tpu.dot_dimension_numbers<[1], [0], [0], [1], [0, 0, 1, 1], [], []>} : vector<16x128xf32>, vector<128x128xf32>, vector<16x128xf32> -> vector<16x128xf32>
    %c0_35 = arith.constant 0 : index
    %c0_36 = arith.constant 0 : index
    %54 = vector.load %arg12[%c0_35, %c0_36] : memref<1x128xf32, #tpu.memory_space<vmem>>, vector<1x128xf32>
    %55 = vector.broadcast %54 : vector<1x128xf32> to vector<16x128xf32>
    %56 = arith.addf %53, %55 : vector<16x128xf32>
    %cst_37 = arith.constant 0.000000e+00 : f32
    %57 = vector.broadcast %cst_37 : f32 to vector<16x128xf32>
    %58 = arith.maximumf %56, %57 : vector<16x128xf32>
    %c0_38 = arith.constant 0 : index
    %c0_39 = arith.constant 0 : index
    %59 = vector.load %arg23[%c0_38, %c0_39] : memref<16x128xf32, #tpu.memory_space<vmem>>, vector<16x128xf32>
    tpu.vector_store %arg23[%c0_38, %c0_39], %58 {strides = array<i32>} : memref<16x128xf32, #tpu.memory_space<vmem>>, vector<16x128xf32>,
    %60 = tpu.iota {dimensions = array<i32: 1>} : vector<16x128xi32>
    %c8_i32 = arith.constant 8 : i32
    %61 = vector.broadcast %c8_i32 : i32 to vector<16x128xi32>
    %62 = arith.cmpi slt, %60, %61 : vector<16x128xi32>
    %cst_40 = arith.constant 0.000000e+00 : f32
    %63 = vector.broadcast %cst_40 : f32 to vector<16x128xf32>
    %64 = arith.select %62, %58, %63 : vector<16x128xi1>, vector<16x128xf32>
    %cst_41 = arith.constant dense<0.000000e+00> : vector<32x128xf32>
    %65 = tpu.matmul %7, %64, %cst_41 {dimension_numbers = #tpu.dot_dimension_numbers<[1], [0], [0], [1], [0, 0, 1, 1], [], []>} : vector<32x16xf32>, vector<16x128xf32>, vector<32x128xf32> -> vector<32x128xf32>
    %66 = arith.addf %65, %24 : vector<32x128xf32>
    %c0_42 = arith.constant 0 : index
    %c0_43 = arith.constant 0 : index
    %67 = vector.load %arg13[%c0_42, %c0_43] : memref<128x128xf32, #tpu.memory_space<vmem>>, vector<128x128xf32>
    %cst_44 = arith.constant dense<0.000000e+00> : vector<32x128xf32>
    %68 = tpu.matmul %66, %67, %cst_44 {dimension_numbers = #tpu.dot_dimension_numbers<[1], [0], [0], [1], [0, 0, 1, 1], [], []>} : vector<32x128xf32>, vector<128x128xf32>, vector<32x128xf32> -> vector<32x128xf32>
    %c0_45 = arith.constant 0 : index
    %c0_46 = arith.constant 0 : index
    %69 = vector.load %arg14[%c0_45, %c0_46] : memref<1x128xf32, #tpu.memory_space<vmem>>, vector<1x128xf32>
    %70 = vector.broadcast %69 : vector<1x128xf32> to vector<32x128xf32>
    %71 = arith.addf %68, %70 : vector<32x128xf32>
    %cst_47 = arith.constant 0.000000e+00 : f32
    %72 = vector.broadcast %cst_47 : f32 to vector<32x128xf32>
    %73 = arith.maximumf %71, %72 : vector<32x128xf32>
    %cst_48 = arith.constant dense<0.000000e+00> : vector<16x128xf32>
    %74 = tpu.matmul %22, %73, %cst_48 {dimension_numbers = #tpu.dot_dimension_numbers<[1], [0], [0], [1], [0, 0, 1, 1], [], []>} : vector<16x32xf32>, vector<32x128xf32>, vector<16x128xf32> -> vector<16x128xf32>
    %c0_49 = arith.constant 0 : index
    %c0_50 = arith.constant 0 : index
    %75 = vector.load %arg15[%c0_49, %c0_50] : memref<128x128xf32, #tpu.memory_space<vmem>>, vector<128x128xf32>
    %cst_51 = arith.constant dense<0.000000e+00> : vector<16x128xf32>
    %76 = tpu.matmul %74, %75, %cst_51 {dimension_numbers = #tpu.dot_dimension_numbers<[1], [0], [0], [1], [0, 0, 1, 1], [], []>} : vector<16x128xf32>, vector<128x128xf32>, vector<16x128xf32> -> vector<16x128xf32>
    %c0_52 = arith.constant 0 : index
    %c0_53 = arith.constant 0 : index
    %77 = vector.load %arg16[%c0_52, %c0_53] : memref<1x128xf32, #tpu.memory_space<vmem>>, vector<1x128xf32>
    %78 = vector.broadcast %77 : vector<1x128xf32> to vector<16x128xf32>
    %79 = arith.addf %76, %78 : vector<16x128xf32>
    %cst_54 = arith.constant 0.000000e+00 : f32
    %80 = vector.broadcast %cst_54 : f32 to vector<16x128xf32>
    %81 = arith.maximumf %79, %80 : vector<16x128xf32>
    %cst_55 = arith.constant dense<0.000000e+00> : vector<32x128xf32>
    %82 = tpu.matmul %7, %81, %cst_55 {dimension_numbers = #tpu.dot_dimension_numbers<[1], [0], [0], [1], [0, 0, 1, 1], [], []>} : vector<32x16xf32>, vector<16x128xf32>, vector<32x128xf32> -> vector<32x128xf32>
    %83 = arith.addf %82, %24 : vector<32x128xf32>
    %c0_56 = arith.constant 0 : index
    %c0_57 = arith.constant 0 : index
    %84 = vector.load %arg17[%c0_56, %c0_57] : memref<128x128xf32, #tpu.memory_space<vmem>>, vector<128x128xf32>
    %cst_58 = arith.constant dense<0.000000e+00> : vector<32x128xf32>
    %85 = tpu.matmul %83, %84, %cst_58 {dimension_numbers = #tpu.dot_dimension_numbers<[1], [0], [0], [1], [0, 0, 1, 1], [], []>} : vector<32x128xf32>, vector<128x128xf32>, vector<32x128xf32> -> vector<32x128xf32>
    %c0_59 = arith.constant 0 : index
    %c0_60 = arith.constant 0 : index
    %86 = vector.load %arg18[%c0_59, %c0_60] : memref<1x128xf32, #tpu.memory_space<vmem>>, vector<1x128xf32>
    %87 = vector.broadcast %86 : vector<1x128xf32> to vector<32x128xf32>
    %88 = arith.addf %85, %87 : vector<32x128xf32>
    %cst_61 = arith.constant 0.000000e+00 : f32
    %89 = vector.broadcast %cst_61 : f32 to vector<32x128xf32>
    %90 = arith.maximumf %88, %89 : vector<32x128xf32>
    %cst_62 = arith.constant dense<0.000000e+00> : vector<16x128xf32>
    %91 = tpu.matmul %22, %90, %cst_62 {dimension_numbers = #tpu.dot_dimension_numbers<[1], [0], [0], [1], [0, 0, 1, 1], [], []>} : vector<16x32xf32>, vector<32x128xf32>, vector<16x128xf32> -> vector<16x128xf32>
    %c0_63 = arith.constant 0 : index
    %c0_64 = arith.constant 0 : index
    %92 = vector.load %arg19[%c0_63, %c0_64] : memref<128x128xf32, #tpu.memory_space<vmem>>, vector<128x128xf32>
    %cst_65 = arith.constant dense<0.000000e+00> : vector<16x128xf32>
    %93 = tpu.matmul %91, %92, %cst_65 {dimension_numbers = #tpu.dot_dimension_numbers<[1], [0], [0], [1], [0, 0, 1, 1], [], []>} : vector<16x128xf32>, vector<128x128xf32>, vector<16x128xf32> -> vector<16x128xf32>
    %c0_66 = arith.constant 0 : index
    %c0_67 = arith.constant 0 : index
    %94 = vector.load %arg20[%c0_66, %c0_67] : memref<1x128xf32, #tpu.memory_space<vmem>>, vector<1x128xf32>
    %95 = vector.broadcast %94 : vector<1x128xf32> to vector<16x128xf32>
    %96 = arith.addf %93, %95 : vector<16x128xf32>
    %97 = math.tanh %96 : vector<16x128xf32>
    %c0_68 = arith.constant 0 : index
    %c0_69 = arith.constant 0 : index
    %98 = vector.load %arg24[%c0_68, %c0_69] : memref<16x128xf32, #tpu.memory_space<vmem>>, vector<16x128xf32>
    tpu.vector_store %arg24[%c0_68, %c0_69], %97 {strides = array<i32>} : memref<16x128xf32, #tpu.memory_space<vmem>>, vector<16x128xf32>,
    %cst_70 = arith.constant dense<0.000000e+00> : vector<32x128xf32>
    %99 = tpu.matmul %7, %23, %cst_70 {dimension_numbers = #tpu.dot_dimension_numbers<[1], [0], [0], [1], [0, 0, 1, 1], [], []>} : vector<32x16xf32>, vector<16x128xf32>, vector<32x128xf32> -> vector<32x128xf32>
    %cst_71 = arith.constant dense<0.000000e+00> : vector<32x128xf32>
    %100 = tpu.matmul %11, %23, %cst_71 {dimension_numbers = #tpu.dot_dimension_numbers<[1], [0], [0], [1], [0, 0, 1, 1], [], []>} : vector<32x16xf32>, vector<16x128xf32>, vector<32x128xf32> -> vector<32x128xf32>
    %101 = arith.subf %99, %100 : vector<32x128xf32>
    %102 = math.absf %101 : vector<32x128xf32>
    %103 = arith.addf %102, %24 : vector<32x128xf32>
    %c0_72 = arith.constant 0 : index
    %c0_73 = arith.constant 0 : index
    %104 = vector.load %arg21[%c0_72, %c0_73] : memref<128x128xf32, #tpu.memory_space<vmem>>, vector<128x128xf32>
    %cst_74 = arith.constant dense<0.000000e+00> : vector<32x128xf32>
    %105 = tpu.matmul %103, %104, %cst_74 {dimension_numbers = #tpu.dot_dimension_numbers<[1], [0], [0], [1], [0, 0, 1, 1], [], []>} : vector<32x128xf32>, vector<128x128xf32>, vector<32x128xf32> -> vector<32x128xf32>
    %c0_75 = arith.constant 0 : index
    %c0_76 = arith.constant 0 : index
    %106 = vector.load %arg22[%c0_75, %c0_76] : memref<1x128xf32, #tpu.memory_space<vmem>>, vector<1x128xf32>
    %107 = vector.broadcast %106 : vector<1x128xf32> to vector<32x128xf32>
    %108 = arith.addf %105, %107 : vector<32x128xf32>
    %c0_77 = arith.constant 0 : index
    %c0_78 = arith.constant 0 : index
    %109 = vector.load %arg25[%c0_77, %c0_78] : memref<32x128xf32, #tpu.memory_space<vmem>>, vector<32x128xf32>
    tpu.vector_store %arg25[%c0_77, %c0_78], %108 {strides = array<i32>} : memref<32x128xf32, #tpu.memory_space<vmem>>, vector<32x128xf32>,
    return
  }
}

</mosaic_0001>

<llo_original>
// kernel: bayesian_gcn_vae_forward.1
$region0: #{bayesian_gcn_vae_forward.1}
  #allocation0 [shape = 'u32[]', space=smem, size = 0x4, offset = 0x4, fixed_abs, tag = 'smem constant byte address 0x4 - core index']
  #allocation1 [shape = 'u32[72,128]{1,0:T(1,128)}', space=vmem, size = 0x9000, scoped, tag = 'internal scratch']
  %s0 = inlined_call_operand.vmem [shape: s32[32,1], index: 0, kind: input, shape index: {}]
  %s1 = inlined_call_operand.vmem [shape: s32[32,1], index: 1, kind: input, shape index: {}]
  %s2 = inlined_call_operand.vmem [shape: s32[1,32], index: 2, kind: input, shape index: {}]
  %s3 = inlined_call_operand.vmem [shape: f32[16,128], index: 3, kind: input, shape index: {}]
  %s4 = inlined_call_operand.vmem [shape: f32[32,128], index: 4, kind: input, shape index: {}]
  %s5 = inlined_call_operand.vmem [shape: f32[128,128], index: 5, kind: input, shape index: {}]
  %s6 = inlined_call_operand.vmem [shape: f32[1,128], index: 6, kind: input, shape index: {}]
  %s7 = inlined_call_operand.vmem [shape: f32[128,128], index: 7, kind: input, shape index: {}]
  %s8 = inlined_call_operand.vmem [shape: f32[1,128], index: 8, kind: input, shape index: {}]
  %s9 = inlined_call_operand.vmem [shape: f32[128,128], index: 9, kind: input, shape index: {}]
  %s10 = inlined_call_operand.vmem [shape: f32[1,128], index: 10, kind: input, shape index: {}]
  %s11 = inlined_call_operand.vmem [shape: f32[128,128], index: 11, kind: input, shape index: {}]
  %s12 = inlined_call_operand.vmem [shape: f32[1,128], index: 12, kind: input, shape index: {}]
  %s13 = inlined_call_operand.vmem [shape: f32[128,128], index: 13, kind: input, shape index: {}]
  %s14 = inlined_call_operand.vmem [shape: f32[1,128], index: 14, kind: input, shape index: {}]
  %s15 = inlined_call_operand.vmem [shape: f32[128,128], index: 15, kind: input, shape index: {}]
  %s16 = inlined_call_operand.vmem [shape: f32[1,128], index: 16, kind: input, shape index: {}]
  %s17 = inlined_call_operand.vmem [shape: f32[128,128], index: 17, kind: input, shape index: {}]
  %s18 = inlined_call_operand.vmem [shape: f32[1,128], index: 18, kind: input, shape index: {}]
  %s19 = inlined_call_operand.vmem [shape: f32[128,128], index: 19, kind: input, shape index: {}]
  %s20 = inlined_call_operand.vmem [shape: f32[1,128], index: 20, kind: input, shape index: {}]
  %s21 = inlined_call_operand.vmem [shape: f32[128,128], index: 21, kind: input, shape index: {}]
  %s22 = inlined_call_operand.vmem [shape: f32[1,128], index: 22, kind: input, shape index: {}]
  %s23 = inlined_call_operand.vmem [shape: f32[16,128], index: 23, kind: output, shape index: {0}]
  %s24 = inlined_call_operand.vmem [shape: f32[16,128], index: 24, kind: output, shape index: {1}]
  %s25 = inlined_call_operand.vmem [shape: f32[32,128], index: 25, kind: output, shape index: {2}]
  %26 = xla_tuple %s23, %s24, %s25
  %s27 = sld [smem:[#allocation0]]
  $region118: #{bayesian_gcn_vae_forward.1} parent=0
    _
  %s29 = ssub.s32 1, %s27
  %s30 = scalar_select 0, %s29, %s27
  // Predicated region
  $region2: #{bayesian_gcn_vae_forward.1} parent=0 // pred_check
    _
  $region3: #{bayesian_gcn_vae_forward.1} parent=0 // pred_check_branch
    %32 = sbr.rel (0) target = $region5
  $region4: #{bayesian_gcn_vae_forward.1} parent=0 // pred_region
    _
  $region5: #{bayesian_gcn_vae_forward.1} parent=0 // pred_fallthru
    _
  // Predicated region
  $region6: #{bayesian_gcn_vae_forward.1} parent=0 // pred_check
    _
  $region7: #{bayesian_gcn_vae_forward.1} parent=0 // pred_check_branch
    %34 = sbr.rel (0) target = $region9
  $region8: #{bayesian_gcn_vae_forward.1} parent=0 // pred_region
    _
  $region9: #{bayesian_gcn_vae_forward.1} parent=0 // pred_fallthru
    _
  // Predicated region
  $region10: #{bayesian_gcn_vae_forward.1} parent=0 // pred_check
    _
  $region11: #{bayesian_gcn_vae_forward.1} parent=0 // pred_check_branch
    %36 = sbr.rel (0) target = $region13
  $region12: #{bayesian_gcn_vae_forward.1} parent=0 // pred_region
    _
  $region13: #{bayesian_gcn_vae_forward.1} parent=0 // pred_fallthru
    _
  // Predicated region
  $region14: #{bayesian_gcn_vae_forward.1} parent=0 // pred_check
    _
  $region15: #{bayesian_gcn_vae_forward.1} parent=0 // pred_check_branch
    %38 = sbr.rel (0) target = $region17
  $region16: #{bayesian_gcn_vae_forward.1} parent=0 // pred_region
    _
  $region17: #{bayesian_gcn_vae_forward.1} parent=0 // pred_fallthru
    _
  // Predicated region
  $region18: #{bayesian_gcn_vae_forward.1} parent=0 // pred_check
    _
  $region19: #{bayesian_gcn_vae_forward.1} parent=0 // pred_check_branch
    %40 = sbr.rel (0) target = $region21
  $region20: #{bayesian_gcn_vae_forward.1} parent=0 // pred_region
    _
  $region21: #{bayesian_gcn_vae_forward.1} parent=0 // pred_fallthru
    _
  // Predicated region
  $region22: #{bayesian_gcn_vae_forward.1} parent=0 // pred_check
    _
  $region23: #{bayesian_gcn_vae_forward.1} parent=0 // pred_check_branch
    %42 = sbr.rel (0) target = $region25
  $region24: #{bayesian_gcn_vae_forward.1} parent=0 // pred_region
    _
  $region25: #{bayesian_gcn_vae_forward.1} parent=0 // pred_fallthru
    _
  // Predicated region
  $region26: #{bayesian_gcn_vae_forward.1} parent=0 // pred_check
    _
  $region27: #{bayesian_gcn_vae_forward.1} parent=0 // pred_check_branch
    %44 = sbr.rel (0) target = $region29
  $region28: #{bayesian_gcn_vae_forward.1} parent=0 // pred_region
    _
  $region29: #{bayesian_gcn_vae_forward.1} parent=0 // pred_fallthru
    _
  // Predicated region
  $region30: #{bayesian_gcn_vae_forward.1} parent=0 // pred_check
    _
  $region31: #{bayesian_gcn_vae_forward.1} parent=0 // pred_check_branch
    %46 = sbr.rel (0) target = $region33
  $region32: #{bayesian_gcn_vae_forward.1} parent=0 // pred_region
    _
  $region33: #{bayesian_gcn_vae_forward.1} parent=0 // pred_fallthru
    _
  // Predicated region
  $region34: #{bayesian_gcn_vae_forward.1} parent=0 // pred_check
    _
  $region35: #{bayesian_gcn_vae_forward.1} parent=0 // pred_check_branch
    %48 = sbr.rel (0) target = $region37
  $region36: #{bayesian_gcn_vae_forward.1} parent=0 // pred_region
    _
  $region37: #{bayesian_gcn_vae_forward.1} parent=0 // pred_fallthru
    _
  // Predicated region
  $region38: #{bayesian_gcn_vae_forward.1} parent=0 // pred_check
    _
  $region39: #{bayesian_gcn_vae_forward.1} parent=0 // pred_check_branch
    %50 = sbr.rel (0) target = $region41
  $region40: #{bayesian_gcn_vae_forward.1} parent=0 // pred_region
    _
  $region41: #{bayesian_gcn_vae_forward.1} parent=0 // pred_fallthru
    _
  // Predicated region
  $region42: #{bayesian_gcn_vae_forward.1} parent=0 // pred_check
    _
  $region43: #{bayesian_gcn_vae_forward.1} parent=0 // pred_check_branch
    %52 = sbr.rel (0) target = $region45
  $region44: #{bayesian_gcn_vae_forward.1} parent=0 // pred_region
    _
  $region45: #{bayesian_gcn_vae_forward.1} parent=0 // pred_fallthru
    _
  // Predicated region
  $region46: #{bayesian_gcn_vae_forward.1} parent=0 // pred_check
    _
  $region47: #{bayesian_gcn_vae_forward.1} parent=0 // pred_check_branch
    %54 = sbr.rel (0) target = $region49
  $region48: #{bayesian_gcn_vae_forward.1} parent=0 // pred_region
    _
  $region49: #{bayesian_gcn_vae_forward.1} parent=0 // pred_fallthru
    _
  // Predicated region
  $region50: #{bayesian_gcn_vae_forward.1} parent=0 // pred_check
    _
  $region51: #{bayesian_gcn_vae_forward.1} parent=0 // pred_check_branch
    %56 = sbr.rel (0) target = $region53
  $region52: #{bayesian_gcn_vae_forward.1} parent=0 // pred_region
    _
  $region53: #{bayesian_gcn_vae_forward.1} parent=0 // pred_fallthru
    _
  // Predicated region
  $region54: #{bayesian_gcn_vae_forward.1} parent=0 // pred_check
    _
  $region55: #{bayesian_gcn_vae_forward.1} parent=0 // pred_check_branch
    %58 = sbr.rel (0) target = $region57
  $region56: #{bayesian_gcn_vae_forward.1} parent=0 // pred_region
    _
  $region57: #{bayesian_gcn_vae_forward.1} parent=0 // pred_fallthru
    _
  // Predicated region
  $region58: #{bayesian_gcn_vae_forward.1} parent=0 // pred_check
    _
  $region59: #{bayesian_gcn_vae_forward.1} parent=0 // pred_check_branch
    %60 = sbr.rel (0) target = $region61
  $region60: #{bayesian_gcn_vae_forward.1} parent=0 // pred_region
    _
  $region61: #{bayesian_gcn_vae_forward.1} parent=0 // pred_fallthru
    _
  // Predicated region
  $region62: #{bayesian_gcn_vae_forward.1} parent=0 // pred_check
    _
  $region63: #{bayesian_gcn_vae_forward.1} parent=0 // pred_check_branch
    %62 = sbr.rel (0) target = $region65
  $region64: #{bayesian_gcn_vae_forward.1} parent=0 // pred_region
    _
  $region65: #{bayesian_gcn_vae_forward.1} parent=0 // pred_fallthru
    _
  // Predicated region
  $region66: #{bayesian_gcn_vae_forward.1} parent=0 // pred_check
    _
  $region67: #{bayesian_gcn_vae_forward.1} parent=0 // pred_check_branch
    %64 = sbr.rel (0) target = $region69
  $region68: #{bayesian_gcn_vae_forward.1} parent=0 // pred_region
    _
  $region69: #{bayesian_gcn_vae_forward.1} parent=0 // pred_fallthru
    _
  // Predicated region
  $region70: #{bayesian_gcn_vae_forward.1} parent=0 // pred_check
    _
  $region71: #{bayesian_gcn_vae_forward.1} parent=0 // pred_check_branch
    %66 = sbr.rel (0) target = $region73
  $region72: #{bayesian_gcn_vae_forward.1} parent=0 // pred_region
    _
  $region73: #{bayesian_gcn_vae_forward.1} parent=0 // pred_fallthru
    _
  // Predicated region
  $region74: #{bayesian_gcn_vae_forward.1} parent=0 // pred_check
    _
  $region75: #{bayesian_gcn_vae_forward.1} parent=0 // pred_check_branch
    %68 = sbr.rel (0) target = $region77
  $region76: #{bayesian_gcn_vae_forward.1} parent=0 // pred_region
    _
  $region77: #{bayesian_gcn_vae_forward.1} parent=0 // pred_fallthru
    _
  // Predicated region
  $region78: #{bayesian_gcn_vae_forward.1} parent=0 // pred_check
    _
  $region79: #{bayesian_gcn_vae_forward.1} parent=0 // pred_check_branch
    %70 = sbr.rel (0) target = $region81
  $region80: #{bayesian_gcn_vae_forward.1} parent=0 // pred_region
    _
  $region81: #{bayesian_gcn_vae_forward.1} parent=0 // pred_fallthru
    _
  // Predicated region
  $region82: #{bayesian_gcn_vae_forward.1} parent=0 // pred_check
    _
  $region83: #{bayesian_gcn_vae_forward.1} parent=0 // pred_check_branch
    %72 = sbr.rel (0) target = $region85
  $region84: #{bayesian_gcn_vae_forward.1} parent=0 // pred_region
    _
  $region85: #{bayesian_gcn_vae_forward.1} parent=0 // pred_fallthru
    _
  // Predicated region
  $region86: #{bayesian_gcn_vae_forward.1} parent=0 // pred_check
    _
  $region87: #{bayesian_gcn_vae_forward.1} parent=0 // pred_check_branch
    %74 = sbr.rel (0) target = $region89
  $region88: #{bayesian_gcn_vae_forward.1} parent=0 // pred_region
    _
  $region89: #{bayesian_gcn_vae_forward.1} parent=0 // pred_fallthru
    _
  // Predicated region
  $region90: #{bayesian_gcn_vae_forward.1} parent=0 // pred_check
    _
  $region91: #{bayesian_gcn_vae_forward.1} parent=0 // pred_check_branch
    %76 = sbr.rel (0) target = $region93
  $region92: #{bayesian_gcn_vae_forward.1} parent=0 // pred_region
    _
  $region93: #{bayesian_gcn_vae_forward.1} parent=0 // pred_fallthru
    _
  %v77 = vld [vmem:[%s0] sm:$0xff]
  %v78 = vld [vmem:[%s0 + $0x8] sm:$0xff]
  %v79 = vld [vmem:[%s0 + $0x10] sm:$0xff]
  %v80 = vld [vmem:[%s0 + $0x18] sm:$0xff]
  %v81 = vld [vmem:[%s1] sm:$0xff]
  %v82 = vld [vmem:[%s1 + $0x8] sm:$0xff]
  %v83 = vld [vmem:[%s1 + $0x10] sm:$0xff]
  %v84 = vld [vmem:[%s1 + $0x18] sm:$0xff]
  %v85 = vld [vmem:[%s2] sm:$0x1]
  %v86 = vlaneseq
  %v87 = vand.u32 %v86, 127
  %88 = vset.pattern.permute.xlu0 0
  %89 = vperm.xlu0 %88, %v77
  %v90 = vpop.permute.xlu0 %89
  %91 = vset.pattern.permute.xlu0 0
  %92 = vperm.xlu0 %91, %v78
  %v93 = vpop.permute.xlu0 %92
  %94 = vset.pattern.permute.xlu0 0
  %95 = vperm.xlu0 %94, %v79
  %v96 = vpop.permute.xlu0 %95
  %97 = vset.pattern.permute.xlu0 0
  %98 = vperm.xlu0 %97, %v80
  %v99 = vpop.permute.xlu0 %98
  %vm100 = vcmp.eq.s32.totalorder %v87, %v90
  %vm101 = vcmp.eq.s32.totalorder %v87, %v93
  %vm102 = vcmp.eq.s32.totalorder %v87, %v96
  %vm103 = vcmp.eq.s32.totalorder %v87, %v99
  %v104 = vsel %vm100, 1, 0
  %v105 = vsel %vm101, 1, 0
  %v106 = vsel %vm102, 1, 0
  %v107 = vsel %vm103, 1, 0
  %v108 = vcvt.s32.f32 %v104
  %v109 = vcvt.s32.f32 %v105
  %v110 = vcvt.s32.f32 %v106
  %v111 = vcvt.s32.f32 %v107
  %112 = vset.pattern.permute.xlu0 0
  %113 = vperm.xlu0 %112, %v81
  %v114 = vpop.permute.xlu0 %113
  %115 = vset.pattern.permute.xlu0 0
  %116 = vperm.xlu0 %115, %v82
  %v117 = vpop.permute.xlu0 %116
  %118 = vset.pattern.permute.xlu0 0
  %119 = vperm.xlu0 %118, %v83
  %v120 = vpop.permute.xlu0 %119
  %121 = vset.pattern.permute.xlu0 0
  %122 = vperm.xlu0 %121, %v84
  %v123 = vpop.permute.xlu0 %122
  %vm124 = vcmp.eq.s32.totalorder %v87, %v114
  %vm125 = vcmp.eq.s32.totalorder %v87, %v117
  %vm126 = vcmp.eq.s32.totalorder %v87, %v120
  %vm127 = vcmp.eq.s32.totalorder %v87, %v123
  %v128 = vsel %vm124, 1, 0
  %v129 = vsel %vm125, 1, 0
  %v130 = vsel %vm126, 1, 0
  %v131 = vsel %vm127, 1, 0
  %v132 = vcvt.s32.f32 %v128
  %v133 = vcvt.s32.f32 %v129
  %v134 = vcvt.s32.f32 %v130
  %v135 = vcvt.s32.f32 %v131
  %v136 = vlaneseq
  %v137 = vshrl.u32 %v136, 7
  %v138 = vadd.s32 %v137, 8
  %v139 = vperm.slane %v85, 0
  %vm140 = vcmp.eq.s32.totalorder %v137, %v139
  %vm141 = vcmp.eq.s32.totalorder %v138, %v139
  %v142 = vsel %vm140, 1, 0
  %v143 = vsel %vm141, 1, 0
  %v144 = vcvt.s32.f32 %v142
  %v145 = vcvt.s32.f32 %v143
  %vm146 = vcmask 261120
  %v147 = vsel %vm146, %v144, 0.0
  %148 = vadd.xlane.f32.xlu0 %v147
  %v149 = vpop.xlane.xlu0 %148
  %v150 = vsel %vm146, %v145, 0.0
  %151 = vadd.xlane.f32.xlu0 %v150
  %v152 = vpop.xlane.xlu0 %151
  %v153 = vmax.f32 %v149, 1.0
  %v154 = vmax.f32 %v152, 1.0
  %v155 = vrcp.pop %v153
  %v156 = vmul.f32 %v153, %v155
  %v157 = vsub.f32 1.0, %v156
  %v158 = vmul.f32 %v155, %v157
  %v159 = vadd.f32 %v155, %v158
  %vm160 = vweird.f32 %v153
  %vm161 = vweird.f32 %v155
  %vm162 = vmor %vm160, %vm161
  %v163 = vsel %vm162, %v155, %v159
  %v164 = vand.u32 2147483647, %v153
  %vm165 = vcmp.eq.f32.partialorder %v164, 8.507059e+37
  %v166 = vand.u32 %v153, 2147483648
  %v167 = vor.u32 1.1754944e-38, %v166
  %v168 = vsel %vm165, %v167, %v163
  %v169 = vmul.f32 %v144, %v168
  %v170 = vrcp.pop %v154
  %v171 = vmul.f32 %v154, %v170
  %v172 = vsub.f32 1.0, %v171
  %v173 = vmul.f32 %v170, %v172
  %v174 = vadd.f32 %v170, %v173
  %vm175 = vweird.f32 %v154
  %vm176 = vweird.f32 %v170
  %vm177 = vmor %vm175, %vm176
  %v178 = vsel %vm177, %v170, %v174
  %v179 = vand.u32 2147483647, %v154
  %vm180 = vcmp.eq.f32.partialorder %v179, 8.507059e+37
  %v181 = vand.u32 %v154, 2147483648
  %v182 = vor.u32 1.1754944e-38, %v181
  %v183 = vsel %vm180, %v182, %v178
  %v184 = vmul.f32 %v145, %v183
  %v185 = vld [vmem:[%s3] sm:$0xff]
  %v186 = vld [vmem:[%s3 + $0x8] sm:$0xff]
  %v187 = vld [vmem:[%s4] sm:$0xff]
  %v188 = vld [vmem:[%s4 + $0x8] sm:$0xff]
  %v189 = vld [vmem:[%s4 + $0x10] sm:$0xff]
  %v190 = vld [vmem:[%s4 + $0x18] sm:$0xff]
  %vm191 = vcmask 130048
  %v193 = vsel %vm191, %v108, 0
  %v196 = vsel %vm191, %v109, 0
  %v199 = vsel %vm191, %v110, 0
  %v202 = vsel %vm191, %v111, 0
  %204 = vmatpush.msra.mxu0 0.0
  %205 = vmatpush.msra.mxu0 0.0
  %206 = vmatpush.msra.mxu0 0.0
  %207 = vmatpush.msra.mxu0 0.0
  %208 = vmatpush.msra.mxu0 0.0
  %209 = vmatpush.msra.mxu0 0.0
  %210 = vmatpush.msra.mxu0 0.0
  %211 = vmatpush.msra.mxu0 0.0
  %212 = vmatpush.msra.mxu0 0.0
  %213 = vmatpush.msra.mxu0 0.0
  %214 = vmatpush.msra.mxu0 0.0
  %215 = vmatpush.msra.mxu0 0.0
  %216 = vmatpush.msra.mxu0 0.0
  %217 = vmatpush.msra.mxu0 0.0
  %218 = vmatpush.msra.mxu0 %v186
  %219 = vmatpush.msra.mxu0 %v185
  %220 = vmatmul.f32.gmra.mxu0 %v193
  %v221 = vpop.f32.mrf.mxu0
  %v222 = vadd.f32 %v187, %v221
  %223 = vmatmul.f32.gmra.mxu0 %v196
  %v224 = vpop.f32.mrf.mxu0
  %v225 = vadd.f32 %v188, %v224
  %226 = vmatmul.f32.gmra.mxu0 %v199
  %v227 = vpop.f32.mrf.mxu0
  %v228 = vadd.f32 %v189, %v227
  %229 = vmatmul.f32.gmra.mxu0 %v202
  %v230 = vpop.f32.mrf.mxu0
  %v231 = vadd.f32 %v190, %v230
  %232 = vdwg.mxu0
  %v233 = vld [vmem:[%s5] sm:$0xff]
  %v234 = vld [vmem:[%s5 + $0x8] sm:$0xff]
  %v235 = vld [vmem:[%s5 + $0x10] sm:$0xff]
  %v236 = vld [vmem:[%s5 + $0x18] sm:$0xff]
  %v237 = vld [vmem:[%s5 + $0x20] sm:$0xff]
  %v238 = vld [vmem:[%s5 + $0x28] sm:$0xff]
  %v239 = vld [vmem:[%s5 + $0x30] sm:$0xff]
  %v240 = vld [vmem:[%s5 + $0x38] sm:$0xff]
  %v241 = vld [vmem:[%s5 + $0x40] sm:$0xff]
  %v242 = vld [vmem:[%s5 + $0x48] sm:$0xff]
  %v243 = vld [vmem:[%s5 + $0x50] sm:$0xff]
  %v244 = vld [vmem:[%s5 + $0x58] sm:$0xff]
  %v245 = vld [vmem:[%s5 + $0x60] sm:$0xff]
  %v246 = vld [vmem:[%s5 + $0x68] sm:$0xff]
  %v247 = vld [vmem:[%s5 + $0x70] sm:$0xff]
  %v248 = vld [vmem:[%s5 + $0x78] sm:$0xff]
  %v249 = vld [vmem:[%s6] sm:$0x1]
  %v251 = vperm.slane %v249, 0
  %253 = vmatpush.msra.mxu0 %v248
  %254 = vmatpush.msra.mxu0 %v247
  %255 = vmatpush.msra.mxu0 %v246
  %256 = vmatpush.msra.mxu0 %v245
  %257 = vmatpush.msra.mxu0 %v244
  %258 = vmatpush.msra.mxu0 %v243
  %259 = vmatpush.msra.mxu0 %v242
  %260 = vmatpush.msra.mxu0 %v241
  %261 = vmatpush.msra.mxu0 %v240
  %262 = vmatpush.msra.mxu0 %v239
  %263 = vmatpush.msra.mxu0 %v238
  %264 = vmatpush.msra.mxu0 %v237
  %265 = vmatpush.msra.mxu0 %v236
  %266 = vmatpush.msra.mxu0 %v235
  %267 = vmatpush.msra.mxu0 %v234
  %268 = vmatpush.msra.mxu0 %v233
  %269 = vmatmul.f32.gmra.mxu0 %v222
  %v270 = vpop.f32.mrf.mxu0
  %v271 = vadd.f32 %v251, %v270
  %272 = vmatmul.f32.gmra.mxu0 %v225
  %v273 = vpop.f32.mrf.mxu0
  %v274 = vadd.f32 %v251, %v273
  %275 = vmatmul.f32.gmra.mxu0 %v228
  %v276 = vpop.f32.mrf.mxu0
  %v277 = vadd.f32 %v251, %v276
  %278 = vmatmul.f32.gmra.mxu0 %v231
  %v279 = vpop.f32.mrf.mxu0
  %v280 = vadd.f32 %v251, %v279
  %281 = vdwg.mxu0
  %v282 = vmax.f32 %v271, 0.0
  %v283 = vmax.f32 %v274, 0.0
  %v284 = vmax.f32 %v277, 0.0
  %v285 = vmax.f32 %v280, 0.0
  %v287 = vsel %vm146, %v169, 0
  %v290 = vsel %vm146, %v184, 0
  %292 = vmatpush.msra.mxu0 0.0
  %293 = vmatpush.msra.mxu0 0.0
  %294 = vmatpush.msra.mxu0 0.0
  %295 = vmatpush.msra.mxu0 0.0
  %296 = vmatpush.msra.mxu0 0.0
  %297 = vmatpush.msra.mxu0 0.0
  %298 = vmatpush.msra.mxu0 0.0
  %299 = vmatpush.msra.mxu0 0.0
  %300 = vmatpush.msra.mxu0 0.0
  %301 = vmatpush.msra.mxu0 0.0
  %302 = vmatpush.msra.mxu0 0.0
  %303 = vmatpush.msra.mxu0 0.0
  %304 = vmatpush.msra.mxu0 %v285
  %305 = vmatpush.msra.mxu0 %v284
  %306 = vmatpush.msra.mxu0 %v283
  %307 = vmatpush.msra.mxu0 %v282
  %308 = vmatmul.f32.gmra.mxu0 %v287
  %v309 = vpop.f32.mrf.mxu0
  %v310 = vadd.f32 0.0, %v309
  %311 = vmatmul.f32.gmra.mxu0 %v290
  %v312 = vpop.f32.mrf.mxu0
  %v313 = vadd.f32 0.0, %v312
  %314 = vdwg.mxu0
  %v315 = vld [vmem:[%s7] sm:$0xff]
  %v316 = vld [vmem:[%s7 + $0x8] sm:$0xff]
  %v317 = vld [vmem:[%s7 + $0x10] sm:$0xff]
  %v318 = vld [vmem:[%s7 + $0x18] sm:$0xff]
  %v319 = vld [vmem:[%s7 + $0x20] sm:$0xff]
  %v320 = vld [vmem:[%s7 + $0x28] sm:$0xff]
  %v321 = vld [vmem:[%s7 + $0x30] sm:$0xff]
  %v322 = vld [vmem:[%s7 + $0x38] sm:$0xff]
  %v323 = vld [vmem:[%s7 + $0x40] sm:$0xff]
  %v324 = vld [vmem:[%s7 + $0x48] sm:$0xff]
  %v325 = vld [vmem:[%s7 + $0x50] sm:$0xff]
  %v326 = vld [vmem:[%s7 + $0x58] sm:$0xff]
  %v327 = vld [vmem:[%s7 + $0x60] sm:$0xff]
  %v328 = vld [vmem:[%s7 + $0x68] sm:$0xff]
  %v329 = vld [vmem:[%s7 + $0x70] sm:$0xff]
  %v330 = vld [vmem:[%s7 + $0x78] sm:$0xff]
  %v331 = vld [vmem:[%s8] sm:$0x1]
  %v333 = vperm.slane %v331, 0
  %335 = vmatpush.msra.mxu0 %v330
  %336 = vmatpush.msra.mxu0 %v329
  %337 = vmatpush.msra.mxu0 %v328
  %338 = vmatpush.msra.mxu0 %v327
  %339 = vmatpush.msra.mxu0 %v326
  %340 = vmatpush.msra.mxu0 %v325
  %341 = vmatpush.msra.mxu0 %v324
  %342 = vmatpush.msra.mxu0 %v323
  %343 = vmatpush.msra.mxu0 %v322
  %344 = vmatpush.msra.mxu0 %v321
  %345 = vmatpush.msra.mxu0 %v320
  %346 = vmatpush.msra.mxu0 %v319
  %347 = vmatpush.msra.mxu0 %v318
  %348 = vmatpush.msra.mxu0 %v317
  %349 = vmatpush.msra.mxu0 %v316
  %350 = vmatpush.msra.mxu0 %v315
  %351 = vmatmul.f32.gmra.mxu0 %v310
  %v352 = vpop.f32.mrf.mxu0
  %v353 = vadd.f32 %v333, %v352
  %354 = vmatmul.f32.gmra.mxu0 %v313
  %v355 = vpop.f32.mrf.mxu0
  %v356 = vadd.f32 %v333, %v355
  %357 = vdwg.mxu0
  %v358 = vmax.f32 %v353, 0.0
  %v359 = vmax.f32 %v356, 0.0
  %360 = vmatpush.msra.mxu0 0.0
  %361 = vmatpush.msra.mxu0 0.0
  %362 = vmatpush.msra.mxu0 0.0
  %363 = vmatpush.msra.mxu0 0.0
  %364 = vmatpush.msra.mxu0 0.0
  %365 = vmatpush.msra.mxu0 0.0
  %366 = vmatpush.msra.mxu0 0.0
  %367 = vmatpush.msra.mxu0 0.0
  %368 = vmatpush.msra.mxu0 0.0
  %369 = vmatpush.msra.mxu0 0.0
  %370 = vmatpush.msra.mxu0 0.0
  %371 = vmatpush.msra.mxu0 0.0
  %372 = vmatpush.msra.mxu0 0.0
  %373 = vmatpush.msra.mxu0 0.0
  %374 = vmatpush.msra.mxu0 %v359
  %375 = vmatpush.msra.mxu0 %v358
  %376 = vmatmul.f32.gmra.mxu0 %v193
  %v377 = vpop.f32.mrf.mxu0
  %v378 = vadd.f32 %v187, %v377
  %379 = vmatmul.f32.gmra.mxu0 %v196
  %v380 = vpop.f32.mrf.mxu0
  %v381 = vadd.f32 %v188, %v380
  %382 = vmatmul.f32.gmra.mxu0 %v199
  %v383 = vpop.f32.mrf.mxu0
  %v384 = vadd.f32 %v189, %v383
  %385 = vmatmul.f32.gmra.mxu0 %v202
  %v386 = vpop.f32.mrf.mxu0
  %v387 = vadd.f32 %v190, %v386
  %388 = vdwg.mxu0
  %v389 = vld [vmem:[%s9] sm:$0xff]
  %v390 = vld [vmem:[%s9 + $0x8] sm:$0xff]
  %v391 = vld [vmem:[%s9 + $0x10] sm:$0xff]
  %v392 = vld [vmem:[%s9 + $0x18] sm:$0xff]
  %v393 = vld [vmem:[%s9 + $0x20] sm:$0xff]
  %v394 = vld [vmem:[%s9 + $0x28] sm:$0xff]
  %v395 = vld [vmem:[%s9 + $0x30] sm:$0xff]
  %v396 = vld [vmem:[%s9 + $0x38] sm:$0xff]
  %v397 = vld [vmem:[%s9 + $0x40] sm:$0xff]
  %v398 = vld [vmem:[%s9 + $0x48] sm:$0xff]
  %v399 = vld [vmem:[%s9 + $0x50] sm:$0xff]
  %v400 = vld [vmem:[%s9 + $0x58] sm:$0xff]
  %v401 = vld [vmem:[%s9 + $0x60] sm:$0xff]
  %v402 = vld [vmem:[%s9 + $0x68] sm:$0xff]
  %v403 = vld [vmem:[%s9 + $0x70] sm:$0xff]
  %v404 = vld [vmem:[%s9 + $0x78] sm:$0xff]
  %v405 = vld [vmem:[%s10] sm:$0x1]
  %v407 = vperm.slane %v405, 0
  %409 = vmatpush.msra.mxu0 %v404
  %410 = vmatpush.msra.mxu0 %v403
  %411 = vmatpush.msra.mxu0 %v402
  %412 = vmatpush.msra.mxu0 %v401
  %413 = vmatpush.msra.mxu0 %v400
  %414 = vmatpush.msra.mxu0 %v399
  %415 = vmatpush.msra.mxu0 %v398
  %416 = vmatpush.msra.mxu0 %v397
  %417 = vmatpush.msra.mxu0 %v396
  %418 = vmatpush.msra.mxu0 %v395
  %419 = vmatpush.msra.mxu0 %v394
  %420 = vmatpush.msra.mxu0 %v393
  %421 = vmatpush.msra.mxu0 %v392
  %422 = vmatpush.msra.mxu0 %v391
  %423 = vmatpush.msra.mxu0 %v390
  %424 = vmatpush.msra.mxu0 %v389
  %425 = vmatmul.f32.gmra.mxu0 %v378
  %v426 = vpop.f32.mrf.mxu0
  %v427 = vadd.f32 %v407, %v426
  %428 = vmatmul.f32.gmra.mxu0 %v381
  %v429 = vpop.f32.mrf.mxu0
  %v430 = vadd.f32 %v407, %v429
  %431 = vmatmul.f32.gmra.mxu0 %v384
  %v432 = vpop.f32.mrf.mxu0
  %v433 = vadd.f32 %v407, %v432
  %434 = vmatmul.f32.gmra.mxu0 %v387
  %v435 = vpop.f32.mrf.mxu0
  %v436 = vadd.f32 %v407, %v435
  %437 = vdwg.mxu0
  %v438 = vmax.f32 %v427, 0.0
  %v439 = vmax.f32 %v430, 0.0
  %v440 = vmax.f32 %v433, 0.0
  %v441 = vmax.f32 %v436, 0.0
  %442 = vmatpush.msra.mxu0 0.0
  %443 = vmatpush.msra.mxu0 0.0
  %444 = vmatpush.msra.mxu0 0.0
  %445 = vmatpush.msra.mxu0 0.0
  %446 = vmatpush.msra.mxu0 0.0
  %447 = vmatpush.msra.mxu0 0.0
  %448 = vmatpush.msra.mxu0 0.0
  %449 = vmatpush.msra.mxu0 0.0
  %450 = vmatpush.msra.mxu0 0.0
  %451 = vmatpush.msra.mxu0 0.0
  %452 = vmatpush.msra.mxu0 0.0
  %453 = vmatpush.msra.mxu0 0.0
  %454 = vmatpush.msra.mxu0 %v441
  %455 = vmatpush.msra.mxu0 %v440
  %456 = vmatpush.msra.mxu0 %v439
  %457 = vmatpush.msra.mxu0 %v438
  %458 = vmatmul.f32.gmra.mxu0 %v287
  %v459 = vpop.f32.mrf.mxu0
  %v460 = vadd.f32 0.0, %v459
  %461 = vmatmul.f32.gmra.mxu0 %v290
  %v462 = vpop.f32.mrf.mxu0
  %v463 = vadd.f32 0.0, %v462
  %464 = vdwg.mxu0
  %v465 = vld [vmem:[%s11] sm:$0xff]
  %v466 = vld [vmem:[%s11 + $0x8] sm:$0xff]
  %v467 = vld [vmem:[%s11 + $0x10] sm:$0xff]
  %v468 = vld [vmem:[%s11 + $0x18] sm:$0xff]
  %v469 = vld [vmem:[%s11 + $0x20] sm:$0xff]
  %v470 = vld [vmem:[%s11 + $0x28] sm:$0xff]
  %v471 = vld [vmem:[%s11 + $0x30] sm:$0xff]
  %v472 = vld [vmem:[%s11 + $0x38] sm:$0xff]
  %v473 = vld [vmem:[%s11 + $0x40] sm:$0xff]
  %v474 = vld [vmem:[%s11 + $0x48] sm:$0xff]
  %v475 = vld [vmem:[%s11 + $0x50] sm:$0xff]
  %v476 = vld [vmem:[%s11 + $0x58] sm:$0xff]
  %v477 = vld [vmem:[%s11 + $0x60] sm:$0xff]
  %v478 = vld [vmem:[%s11 + $0x68] sm:$0xff]
  %v479 = vld [vmem:[%s11 + $0x70] sm:$0xff]
  %v480 = vld [vmem:[%s11 + $0x78] sm:$0xff]
  %v481 = vld [vmem:[%s12] sm:$0x1]
  %v483 = vperm.slane %v481, 0
  %485 = vmatpush.msra.mxu0 %v480
  %486 = vmatpush.msra.mxu0 %v479
  %487 = vmatpush.msra.mxu0 %v478
  %488 = vmatpush.msra.mxu0 %v477
  %489 = vmatpush.msra.mxu0 %v476
  %490 = vmatpush.msra.mxu0 %v475
  %491 = vmatpush.msra.mxu0 %v474
  %492 = vmatpush.msra.mxu0 %v473
  %493 = vmatpush.msra.mxu0 %v472
  %494 = vmatpush.msra.mxu0 %v471
  %495 = vmatpush.msra.mxu0 %v470
  %496 = vmatpush.msra.mxu0 %v469
  %497 = vmatpush.msra.mxu0 %v468
  %498 = vmatpush.msra.mxu0 %v467
  %499 = vmatpush.msra.mxu0 %v466
  %500 = vmatpush.msra.mxu0 %v465
  %501 = vmatmul.f32.gmra.mxu0 %v460
  %v502 = vpop.f32.mrf.mxu0
  %v503 = vadd.f32 %v483, %v502
  %504 = vmatmul.f32.gmra.mxu0 %v463
  %v505 = vpop.f32.mrf.mxu0
  %v506 = vadd.f32 %v483, %v505
  %507 = vdwg.mxu0
  %v508 = vmax.f32 %v503, 0.0
  %v509 = vmax.f32 %v506, 0.0
  %510 = vst [vmem:[%s23] sm:$0xff] %v508
  %511 = vst [vmem:[%s23 + $0x8] sm:$0xff] %v509
  %vm512 = vcmp.lt.s32.totalorder %v87, 8
  %v513 = vsel %vm512, %v508, 0.0
  %v514 = vsel %vm512, %v509, 0.0
  %515 = vmatpush.msra.mxu0 0.0
  %516 = vmatpush.msra.mxu0 0.0
  %517 = vmatpush.msra.mxu0 0.0
  %518 = vmatpush.msra.mxu0 0.0
  %519 = vmatpush.msra.mxu0 0.0
  %520 = vmatpush.msra.mxu0 0.0
  %521 = vmatpush.msra.mxu0 0.0
  %522 = vmatpush.msra.mxu0 0.0
  %523 = vmatpush.msra.mxu0 0.0
  %524 = vmatpush.msra.mxu0 0.0
  %525 = vmatpush.msra.mxu0 0.0
  %526 = vmatpush.msra.mxu0 0.0
  %527 = vmatpush.msra.mxu0 0.0
  %528 = vmatpush.msra.mxu0 0.0
  %529 = vmatpush.msra.mxu0 %v514
  %530 = vmatpush.msra.mxu0 %v513
  %531 = vmatmul.f32.gmra.mxu0 %v193
  %v532 = vpop.f32.mrf.mxu0
  %v533 = vadd.f32 %v187, %v532
  %534 = vmatmul.f32.gmra.mxu0 %v196
  %v535 = vpop.f32.mrf.mxu0
  %v536 = vadd.f32 %v188, %v535
  %537 = vmatmul.f32.gmra.mxu0 %v199
  %v538 = vpop.f32.mrf.mxu0
  %v539 = vadd.f32 %v189, %v538
  %540 = vmatmul.f32.gmra.mxu0 %v202
  %v541 = vpop.f32.mrf.mxu0
  %v542 = vadd.f32 %v190, %v541
  %543 = vdwg.mxu0
  %v544 = vld [vmem:[%s13] sm:$0xff]
  %v545 = vld [vmem:[%s13 + $0x8] sm:$0xff]
  %v546 = vld [vmem:[%s13 + $0x10] sm:$0xff]
  %v547 = vld [vmem:[%s13 + $0x18] sm:$0xff]
  %v548 = vld [vmem:[%s13 + $0x20] sm:$0xff]
  %v549 = vld [vmem:[%s13 + $0x28] sm:$0xff]
  %v550 = vld [vmem:[%s13 + $0x30] sm:$0xff]
  %v551 = vld [vmem:[%s13 + $0x38] sm:$0xff]
  %v552 = vld [vmem:[%s13 + $0x40] sm:$0xff]
  %v553 = vld [vmem:[%s13 + $0x48] sm:$0xff]
  %v554 = vld [vmem:[%s13 + $0x50] sm:$0xff]
  %v555 = vld [vmem:[%s13 + $0x58] sm:$0xff]
  %v556 = vld [vmem:[%s13 + $0x60] sm:$0xff]
  %v557 = vld [vmem:[%s13 + $0x68] sm:$0xff]
  %v558 = vld [vmem:[%s13 + $0x70] sm:$0xff]
  %v559 = vld [vmem:[%s13 + $0x78] sm:$0xff]
  %v560 = vld [vmem:[%s14] sm:$0x1]
  %v562 = vperm.slane %v560, 0
  %564 = vmatpush.msra.mxu0 %v559
  %565 = vmatpush.msra.mxu0 %v558
  %566 = vmatpush.msra.mxu0 %v557
  %567 = vmatpush.msra.mxu0 %v556
  %568 = vmatpush.msra.mxu0 %v555
  %569 = vmatpush.msra.mxu0 %v554
  %570 = vmatpush.msra.mxu0 %v553
  %571 = vmatpush.msra.mxu0 %v552
  %572 = vmatpush.msra.mxu0 %v551
  %573 = vmatpush.msra.mxu0 %v550
  %574 = vmatpush.msra.mxu0 %v549
  %575 = vmatpush.msra.mxu0 %v548
  %576 = vmatpush.msra.mxu0 %v547
  %577 = vmatpush.msra.mxu0 %v546
  %578 = vmatpush.msra.mxu0 %v545
  %579 = vmatpush.msra.mxu0 %v544
  %580 = vmatmul.f32.gmra.mxu0 %v533
  %v581 = vpop.f32.mrf.mxu0
  %v582 = vadd.f32 %v562, %v581
  %583 = vmatmul.f32.gmra.mxu0 %v536
  %v584 = vpop.f32.mrf.mxu0
  %v585 = vadd.f32 %v562, %v584
  %586 = vmatmul.f32.gmra.mxu0 %v539
  %v587 = vpop.f32.mrf.mxu0
  %v588 = vadd.f32 %v562, %v587
  %589 = vmatmul.f32.gmra.mxu0 %v542
  %v590 = vpop.f32.mrf.mxu0
  %v591 = vadd.f32 %v562, %v590
  %592 = vdwg.mxu0
  %v593 = vmax.f32 %v582, 0.0
  %v594 = vmax.f32 %v585, 0.0
  %v595 = vmax.f32 %v588, 0.0
  %v596 = vmax.f32 %v591, 0.0
  %597 = vmatpush.msra.mxu0 0.0
  %598 = vmatpush.msra.mxu0 0.0
  %599 = vmatpush.msra.mxu0 0.0
  %600 = vmatpush.msra.mxu0 0.0
  %601 = vmatpush.msra.mxu0 0.0
  %602 = vmatpush.msra.mxu0 0.0
  %603 = vmatpush.msra.mxu0 0.0
  %604 = vmatpush.msra.mxu0 0.0
  %605 = vmatpush.msra.mxu0 0.0
  %606 = vmatpush.msra.mxu0 0.0
  %607 = vmatpush.msra.mxu0 0.0
  %608 = vmatpush.msra.mxu0 0.0
  %609 = vmatpush.msra.mxu0 %v596
  %610 = vmatpush.msra.mxu0 %v595
  %611 = vmatpush.msra.mxu0 %v594
  %612 = vmatpush.msra.mxu0 %v593
  %613 = vmatmul.f32.gmra.mxu0 %v287
  %v614 = vpop.f32.mrf.mxu0
  %v615 = vadd.f32 0.0, %v614
  %616 = vmatmul.f32.gmra.mxu0 %v290
  %v617 = vpop.f32.mrf.mxu0
  %v618 = vadd.f32 0.0, %v617
  %619 = vdwg.mxu0
  %v620 = vld [vmem:[%s15] sm:$0xff]
  %v621 = vld [vmem:[%s15 + $0x8] sm:$0xff]
  %v622 = vld [vmem:[%s15 + $0x10] sm:$0xff]
  %v623 = vld [vmem:[%s15 + $0x18] sm:$0xff]
  %v624 = vld [vmem:[%s15 + $0x20] sm:$0xff]
  %v625 = vld [vmem:[%s15 + $0x28] sm:$0xff]
  %v626 = vld [vmem:[%s15 + $0x30] sm:$0xff]
  %v627 = vld [vmem:[%s15 + $0x38] sm:$0xff]
  %v628 = vld [vmem:[%s15 + $0x40] sm:$0xff]
  %v629 = vld [vmem:[%s15 + $0x48] sm:$0xff]
  %v630 = vld [vmem:[%s15 + $0x50] sm:$0xff]
  %v631 = vld [vmem:[%s15 + $0x58] sm:$0xff]
  %v632 = vld [vmem:[%s15 + $0x60] sm:$0xff]
  %v633 = vld [vmem:[%s15 + $0x68] sm:$0xff]
  %v634 = vld [vmem:[%s15 + $0x70] sm:$0xff]
  %v635 = vld [vmem:[%s15 + $0x78] sm:$0xff]
  %v636 = vld [vmem:[%s16] sm:$0x1]
  %v638 = vperm.slane %v636, 0
  %640 = vmatpush.msra.mxu0 %v635
  %641 = vmatpush.msra.mxu0 %v634
  %642 = vmatpush.msra.mxu0 %v633
  %643 = vmatpush.msra.mxu0 %v632
  %644 = vmatpush.msra.mxu0 %v631
  %645 = vmatpush.msra.mxu0 %v630
  %646 = vmatpush.msra.mxu0 %v629
  %647 = vmatpush.msra.mxu0 %v628
  %648 = vmatpush.msra.mxu0 %v627
  %649 = vmatpush.msra.mxu0 %v626
  %650 = vmatpush.msra.mxu0 %v625
  %651 = vmatpush.msra.mxu0 %v624
  %652 = vmatpush.msra.mxu0 %v623
  %653 = vmatpush.msra.mxu0 %v622
  %654 = vmatpush.msra.mxu0 %v621
  %655 = vmatpush.msra.mxu0 %v620
  %656 = vmatmul.f32.gmra.mxu0 %v615
  %v657 = vpop.f32.mrf.mxu0
  %v658 = vadd.f32 %v638, %v657
  %659 = vmatmul.f32.gmra.mxu0 %v618
  %v660 = vpop.f32.mrf.mxu0
  %v661 = vadd.f32 %v638, %v660
  %662 = vdwg.mxu0
  %v663 = vmax.f32 %v658, 0.0
  %v664 = vmax.f32 %v661, 0.0
  %665 = vmatpush.msra.mxu0 0.0
  %666 = vmatpush.msra.mxu0 0.0
  %667 = vmatpush.msra.mxu0 0.0
  %668 = vmatpush.msra.mxu0 0.0
  %669 = vmatpush.msra.mxu0 0.0
  %670 = vmatpush.msra.mxu0 0.0
  %671 = vmatpush.msra.mxu0 0.0
  %672 = vmatpush.msra.mxu0 0.0
  %673 = vmatpush.msra.mxu0 0.0
  %674 = vmatpush.msra.mxu0 0.0
  %675 = vmatpush.msra.mxu0 0.0
  %676 = vmatpush.msra.mxu0 0.0
  %677 = vmatpush.msra.mxu0 0.0
  %678 = vmatpush.msra.mxu0 0.0
  %679 = vmatpush.msra.mxu0 %v664
  %680 = vmatpush.msra.mxu0 %v663
  %681 = vmatmul.f32.gmra.mxu0 %v193
  %v682 = vpop.f32.mrf.mxu0
  %v683 = vadd.f32 %v187, %v682
  %684 = vmatmul.f32.gmra.mxu0 %v196
  %v685 = vpop.f32.mrf.mxu0
  %v686 = vadd.f32 %v188, %v685
  %687 = vmatmul.f32.gmra.mxu0 %v199
  %v688 = vpop.f32.mrf.mxu0
  %v689 = vadd.f32 %v189, %v688
  %690 = vmatmul.f32.gmra.mxu0 %v202
  %v691 = vpop.f32.mrf.mxu0
  %v692 = vadd.f32 %v190, %v691
  %693 = vdwg.mxu0
  %v694 = vld [vmem:[%s17] sm:$0xff]
  %v695 = vld [vmem:[%s17 + $0x8] sm:$0xff]
  %v696 = vld [vmem:[%s17 + $0x10] sm:$0xff]
  %v697 = vld [vmem:[%s17 + $0x18] sm:$0xff]
  %v698 = vld [vmem:[%s17 + $0x20] sm:$0xff]
  %v699 = vld [vmem:[%s17 + $0x28] sm:$0xff]
  %v700 = vld [vmem:[%s17 + $0x30] sm:$0xff]
  %v701 = vld [vmem:[%s17 + $0x38] sm:$0xff]
  %v702 = vld [vmem:[%s17 + $0x40] sm:$0xff]
  %v703 = vld [vmem:[%s17 + $0x48] sm:$0xff]
  %v704 = vld [vmem:[%s17 + $0x50] sm:$0xff]
  %v705 = vld [vmem:[%s17 + $0x58] sm:$0xff]
  %v706 = vld [vmem:[%s17 + $0x60] sm:$0xff]
  %v707 = vld [vmem:[%s17 + $0x68] sm:$0xff]
  %v708 = vld [vmem:[%s17 + $0x70] sm:$0xff]
  %v709 = vld [vmem:[%s17 + $0x78] sm:$0xff]
  %v710 = vld [vmem:[%s18] sm:$0x1]
  %v712 = vperm.slane %v710, 0
  %714 = vmatpush.msra.mxu0 %v709
  %715 = vmatpush.msra.mxu0 %v708
  %716 = vmatpush.msra.mxu0 %v707
  %717 = vmatpush.msra.mxu0 %v706
  %718 = vmatpush.msra.mxu0 %v705
  %719 = vmatpush.msra.mxu0 %v704
  %720 = vmatpush.msra.mxu0 %v703
  %721 = vmatpush.msra.mxu0 %v702
  %722 = vmatpush.msra.mxu0 %v701
  %723 = vmatpush.msra.mxu0 %v700
  %724 = vmatpush.msra.mxu0 %v699
  %725 = vmatpush.msra.mxu0 %v698
  %726 = vmatpush.msra.mxu0 %v697
  %727 = vmatpush.msra.mxu0 %v696
  %728 = vmatpush.msra.mxu0 %v695
  %729 = vmatpush.msra.mxu0 %v694
  %730 = vmatmul.f32.gmra.mxu0 %v683
  %v731 = vpop.f32.mrf.mxu0
  %v732 = vadd.f32 %v712, %v731
  %733 = vmatmul.f32.gmra.mxu0 %v686
  %v734 = vpop.f32.mrf.mxu0
  %v735 = vadd.f32 %v712, %v734
  %736 = vmatmul.f32.gmra.mxu0 %v689
  %v737 = vpop.f32.mrf.mxu0
  %v738 = vadd.f32 %v712, %v737
  %739 = vmatmul.f32.gmra.mxu0 %v692
  %v740 = vpop.f32.mrf.mxu0
  %v741 = vadd.f32 %v712, %v740
  %742 = vdwg.mxu0
  %v743 = vmax.f32 %v732, 0.0
  %v744 = vmax.f32 %v735, 0.0
  %v745 = vmax.f32 %v738, 0.0
  %v746 = vmax.f32 %v741, 0.0
  %747 = vmatpush.msra.mxu0 0.0
  %748 = vmatpush.msra.mxu0 0.0
  %749 = vmatpush.msra.mxu0 0.0
  %750 = vmatpush.msra.mxu0 0.0
  %751 = vmatpush.msra.mxu0 0.0
  %752 = vmatpush.msra.mxu0 0.0
  %753 = vmatpush.msra.mxu0 0.0
  %754 = vmatpush.msra.mxu0 0.0
  %755 = vmatpush.msra.mxu0 0.0
  %756 = vmatpush.msra.mxu0 0.0
  %757 = vmatpush.msra.mxu0 0.0
  %758 = vmatpush.msra.mxu0 0.0
  %759 = vmatpush.msra.mxu0 %v746
  %760 = vmatpush.msra.mxu0 %v745
  %761 = vmatpush.msra.mxu0 %v744
  %762 = vmatpush.msra.mxu0 %v743
  %763 = vmatmul.f32.gmra.mxu0 %v287
  %v764 = vpop.f32.mrf.mxu0
  %v765 = vadd.f32 0.0, %v764
  %766 = vmatmul.f32.gmra.mxu0 %v290
  %v767 = vpop.f32.mrf.mxu0
  %v768 = vadd.f32 0.0, %v767
  %769 = vdwg.mxu0
  %v770 = vld [vmem:[%s19] sm:$0xff]
  %v771 = vld [vmem:[%s19 + $0x8] sm:$0xff]
  %v772 = vld [vmem:[%s19 + $0x10] sm:$0xff]
  %v773 = vld [vmem:[%s19 + $0x18] sm:$0xff]
  %v774 = vld [vmem:[%s19 + $0x20] sm:$0xff]
  %v775 = vld [vmem:[%s19 + $0x28] sm:$0xff]
  %v776 = vld [vmem:[%s19 + $0x30] sm:$0xff]
  %v777 = vld [vmem:[%s19 + $0x38] sm:$0xff]
  %v778 = vld [vmem:[%s19 + $0x40] sm:$0xff]
  %v779 = vld [vmem:[%s19 + $0x48] sm:$0xff]
  %v780 = vld [vmem:[%s19 + $0x50] sm:$0xff]
  %v781 = vld [vmem:[%s19 + $0x58] sm:$0xff]
  %v782 = vld [vmem:[%s19 + $0x60] sm:$0xff]
  %v783 = vld [vmem:[%s19 + $0x68] sm:$0xff]
  %v784 = vld [vmem:[%s19 + $0x70] sm:$0xff]
  %v785 = vld [vmem:[%s19 + $0x78] sm:$0xff]
  %v786 = vld [vmem:[%s20] sm:$0x1]
  %v788 = vperm.slane %v786, 0
  %790 = vmatpush.msra.mxu0 %v785
  %791 = vmatpush.msra.mxu0 %v784
  %792 = vmatpush.msra.mxu0 %v783
  %793 = vmatpush.msra.mxu0 %v782
  %794 = vmatpush.msra.mxu0 %v781
  %795 = vmatpush.msra.mxu0 %v780
  %796 = vmatpush.msra.mxu0 %v779
  %797 = vmatpush.msra.mxu0 %v778
  %798 = vmatpush.msra.mxu0 %v777
  %799 = vmatpush.msra.mxu0 %v776
  %800 = vmatpush.msra.mxu0 %v775
  %801 = vmatpush.msra.mxu0 %v774
  %802 = vmatpush.msra.mxu0 %v773
  %803 = vmatpush.msra.mxu0 %v772
  %804 = vmatpush.msra.mxu0 %v771
  %805 = vmatpush.msra.mxu0 %v770
  %806 = vmatmul.f32.gmra.mxu0 %v765
  %v807 = vpop.f32.mrf.mxu0
  %v808 = vadd.f32 %v788, %v807
  %809 = vmatmul.f32.gmra.mxu0 %v768
  %v810 = vpop.f32.mrf.mxu0
  %v811 = vadd.f32 %v788, %v810
  %812 = vdwg.mxu0
  %v813 = vtanh.pop %v808
  %v814 = vtanh.pop %v811
  %815 = vst [vmem:[%s24] sm:$0xff] %v813
  %816 = vst [vmem:[%s24 + $0x8] sm:$0xff] %v814
  %817 = vmatpush.msra.mxu0 0.0
  %818 = vmatpush.msra.mxu0 0.0
  %819 = vmatpush.msra.mxu0 0.0
  %820 = vmatpush.msra.mxu0 0.0
  %821 = vmatpush.msra.mxu0 0.0
  %822 = vmatpush.msra.mxu0 0.0
  %823 = vmatpush.msra.mxu0 0.0
  %824 = vmatpush.msra.mxu0 0.0
  %825 = vmatpush.msra.mxu0 0.0
  %826 = vmatpush.msra.mxu0 0.0
  %827 = vmatpush.msra.mxu0 0.0
  %828 = vmatpush.msra.mxu0 0.0
  %829 = vmatpush.msra.mxu0 0.0
  %830 = vmatpush.msra.mxu0 0.0
  %831 = vmatpush.msra.mxu0 %v186
  %832 = vmatpush.msra.mxu0 %v185
  %833 = vmatmul.f32.gmra.mxu0 %v193
  %v834 = vpop.f32.mrf.mxu0
  %v835 = vadd.f32 0.0, %v834
  %836 = vmatmul.f32.gmra.mxu0 %v196
  %v837 = vpop.f32.mrf.mxu0
  %v838 = vadd.f32 0.0, %v837
  %839 = vmatmul.f32.gmra.mxu0 %v199
  %v840 = vpop.f32.mrf.mxu0
  %v841 = vadd.f32 0.0, %v840
  %842 = vmatmul.f32.gmra.mxu0 %v202
  %v843 = vpop.f32.mrf.mxu0
  %v844 = vadd.f32 0.0, %v843
  %845 = vdwg.mxu0
  %v847 = vsel %vm191, %v132, 0
  %v850 = vsel %vm191, %v133, 0
  %v853 = vsel %vm191, %v134, 0
  %v856 = vsel %vm191, %v135, 0
  %858 = vmatpush.msra.mxu0 0.0
  %859 = vmatpush.msra.mxu0 0.0
  %860 = vmatpush.msra.mxu0 0.0
  %861 = vmatpush.msra.mxu0 0.0
  %862 = vmatpush.msra.mxu0 0.0
  %863 = vmatpush.msra.mxu0 0.0
  %864 = vmatpush.msra.mxu0 0.0
  %865 = vmatpush.msra.mxu0 0.0
  %866 = vmatpush.msra.mxu0 0.0
  %867 = vmatpush.msra.mxu0 0.0
  %868 = vmatpush.msra.mxu0 0.0
  %869 = vmatpush.msra.mxu0 0.0
  %870 = vmatpush.msra.mxu0 0.0
  %871 = vmatpush.msra.mxu0 0.0
  %872 = vmatpush.msra.mxu0 %v186
  %873 = vmatpush.msra.mxu0 %v185
  %874 = vmatmul.f32.gmra.mxu0 %v847
  %v875 = vpop.f32.mrf.mxu0
  %v876 = vadd.f32 0.0, %v875
  %877 = vmatmul.f32.gmra.mxu0 %v850
  %v878 = vpop.f32.mrf.mxu0
  %v879 = vadd.f32 0.0, %v878
  %880 = vmatmul.f32.gmra.mxu0 %v853
  %v881 = vpop.f32.mrf.mxu0
  %v882 = vadd.f32 0.0, %v881
  %883 = vmatmul.f32.gmra.mxu0 %v856
  %v884 = vpop.f32.mrf.mxu0
  %v885 = vadd.f32 0.0, %v884
  %886 = vdwg.mxu0
  %v887 = vsub.f32 %v835, %v876
  %v888 = vsub.f32 %v838, %v879
  %v889 = vsub.f32 %v841, %v882
  %v890 = vsub.f32 %v844, %v885
  %v891 = vand.u32 2147483647, %v887
  %v892 = vand.u32 2147483647, %v888
  %v893 = vand.u32 2147483647, %v889
  %v894 = vand.u32 2147483647, %v890
  %v895 = vadd.f32 %v891, %v187
  %v896 = vadd.f32 %v892, %v188
  %v897 = vadd.f32 %v893, %v189
  %v898 = vadd.f32 %v894, %v190
  %v899 = vld [vmem:[%s21] sm:$0xff]
  %v900 = vld [vmem:[%s21 + $0x8] sm:$0xff]
  %v901 = vld [vmem:[%s21 + $0x10] sm:$0xff]
  %v902 = vld [vmem:[%s21 + $0x18] sm:$0xff]
  %v903 = vld [vmem:[%s21 + $0x20] sm:$0xff]
  %v904 = vld [vmem:[%s21 + $0x28] sm:$0xff]
  %v905 = vld [vmem:[%s21 + $0x30] sm:$0xff]
  %v906 = vld [vmem:[%s21 + $0x38] sm:$0xff]
  %v907 = vld [vmem:[%s21 + $0x40] sm:$0xff]
  %v908 = vld [vmem:[%s21 + $0x48] sm:$0xff]
  %v909 = vld [vmem:[%s21 + $0x50] sm:$0xff]
  %v910 = vld [vmem:[%s21 + $0x58] sm:$0xff]
  %v911 = vld [vmem:[%s21 + $0x60] sm:$0xff]
  %v912 = vld [vmem:[%s21 + $0x68] sm:$0xff]
  %v913 = vld [vmem:[%s21 + $0x70] sm:$0xff]
  %v914 = vld [vmem:[%s21 + $0x78] sm:$0xff]
  %v915 = vld [vmem:[%s22] sm:$0x1]
  %v917 = vperm.slane %v915, 0
  %919 = vmatpush.msra.mxu0 %v914
  %920 = vmatpush.msra.mxu0 %v913
  %921 = vmatpush.msra.mxu0 %v912
  %922 = vmatpush.msra.mxu0 %v911
  %923 = vmatpush.msra.mxu0 %v910
  %924 = vmatpush.msra.mxu0 %v909
  %925 = vmatpush.msra.mxu0 %v908
  %926 = vmatpush.msra.mxu0 %v907
  %927 = vmatpush.msra.mxu0 %v906
  %928 = vmatpush.msra.mxu0 %v905
  %929 = vmatpush.msra.mxu0 %v904
  %930 = vmatpush.msra.mxu0 %v903
  %931 = vmatpush.msra.mxu0 %v902
  %932 = vmatpush.msra.mxu0 %v901
  %933 = vmatpush.msra.mxu0 %v900
  %934 = vmatpush.msra.mxu0 %v899
  %935 = vmatmul.f32.gmra.mxu0 %v895
  %v936 = vpop.f32.mrf.mxu0
  %v937 = vadd.f32 %v917, %v936
  %938 = vmatmul.f32.gmra.mxu0 %v896
  %v939 = vpop.f32.mrf.mxu0
  %v940 = vadd.f32 %v917, %v939
  %941 = vmatmul.f32.gmra.mxu0 %v897
  %v942 = vpop.f32.mrf.mxu0
  %v943 = vadd.f32 %v917, %v942
  %944 = vmatmul.f32.gmra.mxu0 %v898
  %v945 = vpop.f32.mrf.mxu0
  %v946 = vadd.f32 %v917, %v945
  %947 = vdwg.mxu0
  %948 = vst [vmem:[%s25] sm:$0xff] %v937
  %949 = vst [vmem:[%s25 + $0x8] sm:$0xff] %v940
  %950 = vst [vmem:[%s25 + $0x10] sm:$0xff] %v943
  %951 = vst [vmem:[%s25 + $0x18] sm:$0xff] %v946
  // Predicated region
  $region94: #{bayesian_gcn_vae_forward.1} parent=0 // pred_check
    _
  $region95: #{bayesian_gcn_vae_forward.1} parent=0 // pred_check_branch
    %953 = sbr.rel (0) target = $region97
  $region96: #{bayesian_gcn_vae_forward.1} parent=0 // pred_region
    _
  $region97: #{bayesian_gcn_vae_forward.1} parent=0 // pred_fallthru
    _
  // Predicated region
  $region98: #{bayesian_gcn_vae_forward.1} parent=0 // pred_check
    _
  $region99: #{bayesian_gcn_vae_forward.1} parent=0 // pred_check_branch
    %955 = sbr.rel (0) target = $region101
  $region100: #{bayesian_gcn_vae_forward.1} parent=0 // pred_region
    _
  $region101: #{bayesian_gcn_vae_forward.1} parent=0 // pred_fallthru
    _
  // Predicated region
  $region102: #{bayesian_gcn_vae_forward.1} parent=0 // pred_check
    _
  $region103: #{bayesian_gcn_vae_forward.1} parent=0 // pred_check_branch
    %957 = sbr.rel (0) target = $region105
  $region104: #{bayesian_gcn_vae_forward.1} parent=0 // pred_region
    _
  $region105: #{bayesian_gcn_vae_forward.1} parent=0 // pred_fallthru
    _
  // Predicated region
  $region106: #{bayesian_gcn_vae_forward.1} parent=0 // pred_check
    _
  $region107: #{bayesian_gcn_vae_forward.1} parent=0 // pred_check_branch
    %959 = sbr.rel (0) target = $region109
  $region108: #{bayesian_gcn_vae_forward.1} parent=0 // pred_region
    _
  $region109: #{bayesian_gcn_vae_forward.1} parent=0 // pred_fallthru
    _
  // Predicated region
  $region110: #{bayesian_gcn_vae_forward.1} parent=0 // pred_check
    _
  $region111: #{bayesian_gcn_vae_forward.1} parent=0 // pred_check_branch
    %961 = sbr.rel (0) target = $region113
  $region112: #{bayesian_gcn_vae_forward.1} parent=0 // pred_region
    _
  $region113: #{bayesian_gcn_vae_forward.1} parent=0 // pred_fallthru
    _
  // Predicated region
  $region114: #{bayesian_gcn_vae_forward.1} parent=0 // pred_check
    _
  $region115: #{bayesian_gcn_vae_forward.1} parent=0 // pred_check_branch
    %963 = sbr.rel (0) target = $region117
  $region116: #{bayesian_gcn_vae_forward.1} parent=0 // pred_region
    _
  $region117: #{bayesian_gcn_vae_forward.1} parent=0 // pred_fallthru
    _

</llo_original>
